<compile_context>
chip_gen: v7x
topology: tpu7x:2x2x1
jax: 0.10.0
libtpu: 0.0.40
codegen_flags: <defaults>
</compile_context>

<pallas_src>
import functools

import jax
import jax.numpy as jnp
from jax.experimental import pallas as pl
from jax.experimental.pallas import tpu as pltpu


# ----------------------------------------------------------------------------
# Kernels
# ----------------------------------------------------------------------------

def _abn_onepass_kernel(*refs, n, affine):
    """Single-pass stats + normalize for one (batch, channel-tile) block."""
    if affine:
        x_ref, w_ref, b_ref, o_ref = refs
    else:
        x_ref, o_ref = refs
    _, sbj, tc, st = x_ref.shape
    unroll = sbj <= 8

    # ---- Phase 1: statistics (f32 accumulation, trial axis first on VALU) ----
    zero = jnp.zeros((tc, st), jnp.float32)

    def acc_body(i, carry):
        s, ss = carry
        xi = x_ref[0, i].astype(jnp.float32)          # (tc, st)
        return s + xi, ss + xi * xi

    s_lane, ss_lane = jax.lax.fori_loop(0, sbj, acc_body, (zero, zero),
                                        unroll=unroll)

    s = jnp.sum(s_lane, axis=-1, keepdims=True)       # (tc, 1) — one XLU reduce
    ss = jnp.sum(ss_lane, axis=-1, keepdims=True)     # (tc, 1)

    mean = s * jnp.float32(1.0 / n)
    # unbiased variance (torch.var default); clamp against cancellation
    var = jnp.maximum((ss - mean * s) * jnp.float32(1.0 / (n - 1)),
                      jnp.float32(0.0))
    inv = jax.lax.rsqrt(var + jnp.float32(1e-8))      # EUP

    if affine:
        scale = w_ref[...] * inv                      # (tc, 1)
        shift = b_ref[...] - mean * scale
    else:
        scale = inv
        shift = -mean * scale

    # ---- Phase 2: re-index x_ref, one FMA per element, per-trial stores ----
    @pl.loop(0, sbj, unroll=unroll)
    def _(i):
        xi = x_ref[0, i].astype(jnp.float32)
        o_ref[0, i] = (xi * scale + shift).astype(o_ref.dtype)


def _abn_stats_kernel(*refs, n, affine):
    """Fallback pass 1: accumulate sum / sumsq over the trial grid axis,
    finalize scale/shift on the last trial-chunk step."""
    if affine:
        x_ref, w_ref, b_ref, scale_ref, shift_ref, s_acc, ss_acc = refs
    else:
        x_ref, scale_ref, shift_ref, s_acc, ss_acc = refs
    _, tchunk, tc, st = x_ref.shape
    t = pl.program_id(2)
    unroll = tchunk <= 8

    @pl.when(t == 0)
    def _():
        s_acc[...] = jnp.zeros_like(s_acc)
        ss_acc[...] = jnp.zeros_like(ss_acc)

    zero = jnp.zeros((tc, st), jnp.float32)

    def acc_body(i, carry):
        s, ss = carry
        xi = x_ref[0, i].astype(jnp.float32)
        return s + xi, ss + xi * xi

    s_lane, ss_lane = jax.lax.fori_loop(0, tchunk, acc_body, (zero, zero),
                                        unroll=unroll)
    s_acc[...] += jnp.sum(s_lane, axis=-1, keepdims=True)     # (tc, 1)
    ss_acc[...] += jnp.sum(ss_lane, axis=-1, keepdims=True)   # (tc, 1)

    @pl.when(t == pl.num_programs(2) - 1)
    def _():
        s = s_acc[...]
        ss = ss_acc[...]
        mean = s * jnp.float32(1.0 / n)
        var = jnp.maximum((ss - mean * s) * jnp.float32(1.0 / (n - 1)),
                          jnp.float32(0.0))
        inv = jax.lax.rsqrt(var + jnp.float32(1e-8))
        if affine:
            scale = w_ref[...] * inv
            shift = b_ref[...] - mean * scale
        else:
            scale = inv
            shift = -mean * scale
        scale_ref[...] = scale.reshape(1, tc, 1)
        shift_ref[...] = shift.reshape(1, tc, 1)


def _abn_norm_kernel(x_ref, scale_ref, shift_ref, o_ref):
    """Fallback pass 2: elementwise y = x*scale + shift."""
    _, tchunk, tc, st = x_ref.shape
    scale = scale_ref[...].reshape(tc, 1)
    shift = shift_ref[...].reshape(tc, 1)

    @pl.loop(0, tchunk, unroll=tchunk <= 8)
    def _(i):
        xi = x_ref[0, i].astype(jnp.float32)
        o_ref[0, i] = (xi * scale + shift).astype(o_ref.dtype)


# ----------------------------------------------------------------------------
# Tiling / VMEM planning
# ----------------------------------------------------------------------------

def _vmem_plan():
    """(block_budget_bytes, vmem_limit_bytes) per TPU generation."""
    try:
        cap = pltpu.get_tpu_info().vmem_capacity_bytes
    except Exception:
        cap = 64 << 20  # be conservative (v7x-sized) if the query fails
    if cap >= (100 << 20):          # v5e / v6e: 128 MiB VMEM
        return 12 << 20, 64 << 20
    else:                           # v7x: 64 MiB VMEM — tighter plan
        return 4 << 20, 40 << 20


def _choose_channel_tile(C, bytes_per_channel, budget, align):
    """Largest channel tile (full C, or multiple of `align`, or multiple of 8)
    dividing C whose single block fits the byte budget.  None => fallback."""
    cands = [C]
    cands += [c for c in range(C - 1, 0, -1) if C % c == 0 and c % align == 0]
    cands += [c for c in range(C - 1, 0, -1)
              if C % c == 0 and c % 8 == 0 and c % align != 0]
    for c in cands:
        if c * bytes_per_channel <= budget:
            return c
    return None


def _min_channel_tile(C, align):
    """Smallest layout-valid channel tile for the two-pass fallback."""
    for c in range(1, C):
        if C % c == 0 and c % align == 0:
            return c
    for c in range(1, C):
        if C % c == 0 and c % 8 == 0:
            return c
    return C


# ----------------------------------------------------------------------------
# Wrapper
# ----------------------------------------------------------------------------

def adaptive_batch_norm_2d(x, sbj_trials, weight=None, bias=None, affine=True,
                           block_budget_bytes=None, donate_x=False):
    """Eval-mode AdaptiveBatchNorm2d forward.

    x: (batch*sbj_trials, C, S, T); weight/bias: (C,) when affine=True.
    """
    bt, C, S, T = x.shape
    assert bt % sbj_trials == 0, "batch must be a multiple of sbj_trials"
    batch = bt // sbj_trials
    ST = S * T
    n = sbj_trials * ST
    assert n > 1, "need >1 element per group for unbiased variance"
    if affine:
        assert weight is not None and bias is not None

    # Native-layout view: pure metadata reshape, no transpose / HBM round trip.
    xr = x.reshape(batch, sbj_trials, C, ST)
    itemsize = x.dtype.itemsize
    align = max(8, 32 // itemsize)   # sublane packing: f32->8, bf16->16, int8->32

    budget, vmem_limit = _vmem_plan()
    if block_budget_bytes is not None:
        budget = block_budget_bytes

    if affine:
        w2 = weight.reshape(C, 1).astype(jnp.float32)
        b2 = bias.reshape(C, 1).astype(jnp.float32)

    bytes_per_channel = sbj_trials * ST * itemsize
    tc = _choose_channel_tile(C, bytes_per_channel, budget, align)

    compiler = lambda sem: pltpu.CompilerParams(
        dimension_semantics=sem, vmem_limit_bytes=vmem_limit)
    io_alias = {0: 0} if donate_x else {}

    if tc is not None:
        # --------------------- single-pass path ---------------------
        # Keep >=2 grid steps so both v7x TensorCores get work.
        if batch * (C // tc) < 2:
            smaller = [c for c in range(tc - 1, 0, -1)
                       if C % c == 0 and (c % align == 0 or c % 8 == 0)]
            if smaller:
                tc = smaller[0]
            # else: C has no smaller layout-valid divisor; accept 1 step.

        grid = (batch, C // tc)
        kernel = functools.partial(_abn_onepass_kernel, n=n, affine=affine)

        in_specs = [pl.BlockSpec((1, sbj_trials, tc, ST),
                                 lambda b, c: (b, 0, c, 0))]
        operands = [xr]
        if affine:
            in_specs += [pl.BlockSpec((tc, 1), lambda b, c: (c, 0))] * 2
            operands += [w2, b2]

        n_elems = batch * C * n
        cost = pl.CostEstimate(
            flops=5 * n_elems,
            transcendentals=batch * C,
            bytes_accessed=2 * n_elems * itemsize + (2 * C * 4 if affine else 0),
        )

        out = pl.pallas_call(
            kernel,
            out_shape=jax.ShapeDtypeStruct((batch, sbj_trials, C, ST), x.dtype),
            grid=grid,
            in_specs=in_specs,
            out_specs=pl.BlockSpec((1, sbj_trials, tc, ST),
                                   lambda b, c: (b, 0, c, 0)),
            compiler_params=compiler(("parallel", "parallel")),
            cost_estimate=cost,
            input_output_aliases=io_alias,
        )(*operands)
        return out.reshape(bt, C, S, T)

    # --------------------- two-pass fallback path ---------------------
    # Even the smallest aligned channel tile exceeds the budget: tile the trial
    # axis as an 'arbitrary' reduction with VMEM accumulators (stats kernel),
    # then normalize elementwise.
    tc = _min_channel_tile(C, align)
    per_trial = ST * tc * itemsize
    tchunk = 1
    for d in range(sbj_trials, 0, -1):
        if sbj_trials % d == 0 and d * per_trial <= budget:
            tchunk = d
            break
    # TODO(synk): if even a single trial exceeds the budget, additionally chunk ST.

    grid = (batch, C // tc, sbj_trials // tchunk)

    stats_kernel = functools.partial(_abn_stats_kernel, n=n, affine=affine)
    in_specs = [pl.BlockSpec((1, tchunk, tc, ST), lambda b, c, t: (b, t, c, 0))]
    operands = [xr]
    if affine:
        in_specs += [pl.BlockSpec((tc, 1), lambda b, c, t: (c, 0))] * 2
        operands += [w2, b2]

    scale, shift = pl.pallas_call(
        stats_kernel,
        out_shape=(jax.ShapeDtypeStruct((batch, C, 1), jnp.float32),
                   jax.ShapeDtypeStruct((batch, C, 1), jnp.float32)),
        grid=grid,
        in_specs=in_specs,
        out_specs=(pl.BlockSpec((1, tc, 1), lambda b, c, t: (b, c, 0)),
                   pl.BlockSpec((1, tc, 1), lambda b, c, t: (b, c, 0))),
        scratch_shapes=[pltpu.VMEM((tc, 1), jnp.float32),
                        pltpu.VMEM((tc, 1), jnp.float32)],
        compiler_params=compiler(("parallel", "parallel", "arbitrary")),
    )(*operands)

    out = pl.pallas_call(
        _abn_norm_kernel,
        out_shape=jax.ShapeDtypeStruct((batch, sbj_trials, C, ST), x.dtype),
        grid=grid,
        in_specs=[pl.BlockSpec((1, tchunk, tc, ST), lambda b, c, t: (b, t, c, 0)),
                  pl.BlockSpec((1, tc, 1), lambda b, c, t: (b, c, 0)),
                  pl.BlockSpec((1, tc, 1), lambda b, c, t: (b, c, 0))],
        out_specs=pl.BlockSpec((1, tchunk, tc, ST), lambda b, c, t: (b, t, c, 0)),
        compiler_params=compiler(("parallel", "parallel", "parallel")),
        input_output_aliases=io_alias,
    )(xr, scale, shift)
    return out.reshape(bt, C, S, T)


# ----------------------------------------------------------------------------
# Reference + demo
# ----------------------------------------------------------------------------

def _reference(x, sbj_trials, weight=None, bias=None):
    bt, C, S, T = x.shape
    batch = bt // sbj_trials
    xr = x.reshape(batch, sbj_trials, C, S, T).astype(jnp.float32)
    mean = xr.mean(axis=(-4, -2, -1), keepdims=True)
    var = xr.var(axis=(-4, -2, -1), keepdims=True, ddof=1)  # unbiased like torch
    y = ((xr - mean) / jnp.sqrt(var + 1e-8)).reshape(bt, C, S, T)
    if weight is not None:
        y = y * weight.reshape(-1, 1, 1) + bias.reshape(-1, 1, 1)
    return y


if __name__ == "__main__":
    key = jax.random.PRNGKey(0)
    kx, kw, kb = jax.random.split(key, 3)

    # 2 subjects x 4 trials per subject, 4 channels, 8x16 spatial/time (ST=128)
    batch_subjects, sbj_trials = 2, 4
    C, S, T = 4, 8, 16
    x = jax.random.normal(kx, (batch_subjects * sbj_trials, C, S, T),
                          dtype=jnp.float32)

    # default BatchNorm2d affine init (weight=1, bias=0)
    weight = jnp.ones((C,), jnp.float32)
    bias = jnp.zeros((C,), jnp.float32)
    out = jax.block_until_ready(adaptive_batch_norm_2d(x, sbj_trials, weight, bias))
    assert out.shape == x.shape
    assert jnp.allclose(out, _reference(x, sbj_trials, weight, bias),
                        atol=1e-5, rtol=1e-5)

    # non-trivial affine
    weight2 = 0.5 + jax.random.uniform(kw, (C,), jnp.float32)
    bias2 = jax.random.normal(kb, (C,), jnp.float32)
    out2 = jax.block_until_ready(
        adaptive_batch_norm_2d(x, sbj_trials, weight2, bias2))
    assert jnp.allclose(out2, _reference(x, sbj_trials, weight2, bias2),
                        atol=1e-5, rtol=1e-5)

    # affine=False specialization (no weight/bias DMAs)
    out3 = jax.block_until_ready(
        adaptive_batch_norm_2d(x, sbj_trials, affine=False))
    assert jnp.allclose(out3, _reference(x, sbj_trials), atol=1e-5, rtol=1e-5)

    # bf16 input: statistics still accumulate in f32 inside the kernel
    xb = x.astype(jnp.bfloat16)
    out4 = jax.block_until_ready(
        adaptive_batch_norm_2d(xb, sbj_trials, weight2, bias2))
    assert out4.dtype == jnp.bfloat16
    ref4 = _reference(xb.astype(jnp.float32), sbj_trials, weight2, bias2)
    assert jnp.allclose(out4.astype(jnp.float32), ref4, atol=5e-2, rtol=5e-2)

    # force the two-pass (stats -> normalize) fallback with a tiny block budget
    out5 = jax.block_until_ready(
        adaptive_batch_norm_2d(x, sbj_trials, weight2, bias2,
                               block_budget_bytes=1024))
    assert jnp.allclose(out5, _reference(x, sbj_trials, weight2, bias2),
                        atol=1e-5, rtol=1e-5)

    print("KERNEL_OK")
</pallas_src>

<mosaic_0001>
module attributes {stable_mosaic.version = 11 : i64} {
  func.func @_abn_onepass_kernel(%arg0: i32, %arg1: i32, %arg2: memref<1x4x4x128xf32, #tpu.memory_space<vmem>>, %arg3: memref<4x1xf32, #tpu.memory_space<vmem>>, %arg4: memref<4x1xf32, #tpu.memory_space<vmem>>, %arg5: memref<1x4x4x128xf32, #tpu.memory_space<vmem>>) attributes {dimension_semantics = [#tpu.dimension_semantics<parallel>, #tpu.dimension_semantics<parallel>], iteration_bounds = array<i64: 2, 1>, scalar_prefetch = 0 : i64, scratch_operands = 0 : i64, tpu.core_type = #tpu.core_type<tc>, window_params = [{transform_indices = @transform_0, window_bounds = array<i64: 1, 4, 4, 128>}, {transform_indices = @transform_1, window_bounds = array<i64: 4, 1>}, {transform_indices = @transform_2, window_bounds = array<i64: 4, 1>}, {transform_indices = @transform_3, window_bounds = array<i64: 1, 4, 4, 128>}]} {
    %cst = arith.constant 0.000000e+00 : f32
    %0 = vector.broadcast %cst : f32 to vector<4x128xf32>
    %c0_i32 = arith.constant 0 : i32
    %c0 = arith.constant 0 : index
    %1 = arith.index_cast %c0_i32 : i32 to index
    %c0_0 = arith.constant 0 : index
    %c0_1 = arith.constant 0 : index
    %2 = vector.load %arg2[%c0, %1, %c0_0, %c0_1] : memref<1x4x4x128xf32, #tpu.memory_space<vmem>>, vector<1x1x4x128xf32>
    %3 = vector.shape_cast %2 : vector<1x1x4x128xf32> to vector<4x128xf32>
    %4 = arith.addf %0, %3 : vector<4x128xf32>
    %5 = arith.mulf %3, %3 : vector<4x128xf32>
    %6 = arith.addf %0, %5 : vector<4x128xf32>
    %c1_i32 = arith.constant 1 : i32
    %c0_2 = arith.constant 0 : index
    %7 = arith.index_cast %c1_i32 : i32 to index
    %c0_3 = arith.constant 0 : index
    %c0_4 = arith.constant 0 : index
    %8 = vector.load %arg2[%c0_2, %7, %c0_3, %c0_4] : memref<1x4x4x128xf32, #tpu.memory_space<vmem>>, vector<1x1x4x128xf32>
    %9 = vector.shape_cast %8 : vector<1x1x4x128xf32> to vector<4x128xf32>
    %10 = arith.addf %4, %9 : vector<4x128xf32>
    %11 = arith.mulf %9, %9 : vector<4x128xf32>
    %12 = arith.addf %6, %11 : vector<4x128xf32>
    %c2_i32 = arith.constant 2 : i32
    %c0_5 = arith.constant 0 : index
    %13 = arith.index_cast %c2_i32 : i32 to index
    %c0_6 = arith.constant 0 : index
    %c0_7 = arith.constant 0 : index
    %14 = vector.load %arg2[%c0_5, %13, %c0_6, %c0_7] : memref<1x4x4x128xf32, #tpu.memory_space<vmem>>, vector<1x1x4x128xf32>
    %15 = vector.shape_cast %14 : vector<1x1x4x128xf32> to vector<4x128xf32>
    %16 = arith.addf %10, %15 : vector<4x128xf32>
    %17 = arith.mulf %15, %15 : vector<4x128xf32>
    %18 = arith.addf %12, %17 : vector<4x128xf32>
    %c3_i32 = arith.constant 3 : i32
    %c0_8 = arith.constant 0 : index
    %19 = arith.index_cast %c3_i32 : i32 to index
    %c0_9 = arith.constant 0 : index
    %c0_10 = arith.constant 0 : index
    %20 = vector.load %arg2[%c0_8, %19, %c0_9, %c0_10] : memref<1x4x4x128xf32, #tpu.memory_space<vmem>>, vector<1x1x4x128xf32>
    %21 = vector.shape_cast %20 : vector<1x1x4x128xf32> to vector<4x128xf32>
    %22 = arith.addf %16, %21 : vector<4x128xf32>
    %23 = arith.mulf %21, %21 : vector<4x128xf32>
    %24 = arith.addf %18, %23 : vector<4x128xf32>
    %c4_i32 = arith.constant 4 : i32
    %cst_11 = arith.constant dense<0.000000e+00> : vector<4xf32>
    %25 = vector.multi_reduction <add>, %22, %cst_11 [1] : vector<4x128xf32> to vector<4xf32>
    %26 = vector.shape_cast %25 : vector<4xf32> to vector<4x1xf32>
    %cst_12 = arith.constant dense<0.000000e+00> : vector<4xf32>
    %27 = vector.multi_reduction <add>, %24, %cst_12 [1] : vector<4x128xf32> to vector<4xf32>
    %28 = vector.shape_cast %27 : vector<4xf32> to vector<4x1xf32>
    %cst_13 = arith.constant 0.001953125 : f32
    %29 = vector.broadcast %cst_13 : f32 to vector<4x1xf32>
    %30 = arith.mulf %26, %29 : vector<4x1xf32>
    %31 = arith.mulf %30, %26 : vector<4x1xf32>
    %32 = arith.subf %28, %31 : vector<4x1xf32>
    %cst_14 = arith.constant 0.00195694715 : f32
    %33 = vector.broadcast %cst_14 : f32 to vector<4x1xf32>
    %34 = arith.mulf %32, %33 : vector<4x1xf32>
    %cst_15 = arith.constant 0.000000e+00 : f32
    %35 = vector.broadcast %cst_15 : f32 to vector<4x1xf32>
    %36 = arith.maximumf %34, %35 : vector<4x1xf32>
    %cst_16 = arith.constant 9.99999993E-9 : f32
    %37 = vector.broadcast %cst_16 : f32 to vector<4x1xf32>
    %38 = arith.addf %36, %37 : vector<4x1xf32>
    %39 = math.rsqrt %38 : vector<4x1xf32>
    %c0_17 = arith.constant 0 : index
    %c0_18 = arith.constant 0 : index
    %40 = vector.load %arg3[%c0_17, %c0_18] : memref<4x1xf32, #tpu.memory_space<vmem>>, vector<4x1xf32>
    %41 = arith.mulf %40, %39 : vector<4x1xf32>
    %c0_19 = arith.constant 0 : index
    %c0_20 = arith.constant 0 : index
    %42 = vector.load %arg4[%c0_19, %c0_20] : memref<4x1xf32, #tpu.memory_space<vmem>>, vector<4x1xf32>
    %43 = arith.mulf %30, %41 : vector<4x1xf32>
    %44 = arith.subf %42, %43 : vector<4x1xf32>
    %c0_i32_21 = arith.constant 0 : i32
    %c1_i32_22 = arith.constant 1 : i32
    %45 = arith.muli %c0_i32_21, %c1_i32_22 : i32
    %c0_i32_23 = arith.constant 0 : i32
    %46 = arith.addi %c0_i32_23, %45 : i32
    %c0_24 = arith.constant 0 : index
    %47 = arith.index_cast %46 : i32 to index
    %c0_25 = arith.constant 0 : index
    %c0_26 = arith.constant 0 : index
    %48 = vector.load %arg2[%c0_24, %47, %c0_25, %c0_26] : memref<1x4x4x128xf32, #tpu.memory_space<vmem>>, vector<1x1x4x128xf32>
    %49 = vector.shape_cast %48 : vector<1x1x4x128xf32> to vector<4x128xf32>
    %50 = vector.broadcast %41 : vector<4x1xf32> to vector<4x128xf32>
    %51 = arith.mulf %49, %50 : vector<4x128xf32>
    %52 = vector.broadcast %44 : vector<4x1xf32> to vector<4x128xf32>
    %53 = arith.addf %51, %52 : vector<4x128xf32>
    %c0_27 = arith.constant 0 : index
    %54 = arith.index_cast %46 : i32 to index
    %c0_28 = arith.constant 0 : index
    %c0_29 = arith.constant 0 : index
    %55 = vector.load %arg5[%c0_27, %54, %c0_28, %c0_29] : memref<1x4x4x128xf32, #tpu.memory_space<vmem>>, vector<1x1x4x128xf32>
    %56 = vector.shape_cast %55 : vector<1x1x4x128xf32> to vector<4x128xf32>
    %57 = vector.shape_cast %53 : vector<4x128xf32> to vector<1x1x4x128xf32>
    tpu.vector_store %arg5[%c0_27, %54, %c0_28, %c0_29], %57 {strides = array<i32>} : memref<1x4x4x128xf32, #tpu.memory_space<vmem>>, vector<1x1x4x128xf32>,
    %c1_i32_30 = arith.constant 1 : i32
    %c1_i32_31 = arith.constant 1 : i32
    %58 = arith.muli %c1_i32_30, %c1_i32_31 : i32
    %c0_i32_32 = arith.constant 0 : i32
    %59 = arith.addi %c0_i32_32, %58 : i32
    %c0_33 = arith.constant 0 : index
    %60 = arith.index_cast %59 : i32 to index
    %c0_34 = arith.constant 0 : index
    %c0_35 = arith.constant 0 : index
    %61 = vector.load %arg2[%c0_33, %60, %c0_34, %c0_35] : memref<1x4x4x128xf32, #tpu.memory_space<vmem>>, vector<1x1x4x128xf32>
    %62 = vector.shape_cast %61 : vector<1x1x4x128xf32> to vector<4x128xf32>
    %63 = vector.broadcast %41 : vector<4x1xf32> to vector<4x128xf32>
    %64 = arith.mulf %62, %63 : vector<4x128xf32>
    %65 = vector.broadcast %44 : vector<4x1xf32> to vector<4x128xf32>
    %66 = arith.addf %64, %65 : vector<4x128xf32>
    %c0_36 = arith.constant 0 : index
    %67 = arith.index_cast %59 : i32 to index
    %c0_37 = arith.constant 0 : index
    %c0_38 = arith.constant 0 : index
    %68 = vector.load %arg5[%c0_36, %67, %c0_37, %c0_38] : memref<1x4x4x128xf32, #tpu.memory_space<vmem>>, vector<1x1x4x128xf32>
    %69 = vector.shape_cast %68 : vector<1x1x4x128xf32> to vector<4x128xf32>
    %70 = vector.shape_cast %66 : vector<4x128xf32> to vector<1x1x4x128xf32>
    tpu.vector_store %arg5[%c0_36, %67, %c0_37, %c0_38], %70 {strides = array<i32>} : memref<1x4x4x128xf32, #tpu.memory_space<vmem>>, vector<1x1x4x128xf32>,
    %c2_i32_39 = arith.constant 2 : i32
    %c1_i32_40 = arith.constant 1 : i32
    %71 = arith.muli %c2_i32_39, %c1_i32_40 : i32
    %c0_i32_41 = arith.constant 0 : i32
    %72 = arith.addi %c0_i32_41, %71 : i32
    %c0_42 = arith.constant 0 : index
    %73 = arith.index_cast %72 : i32 to index
    %c0_43 = arith.constant 0 : index
    %c0_44 = arith.constant 0 : index
    %74 = vector.load %arg2[%c0_42, %73, %c0_43, %c0_44] : memref<1x4x4x128xf32, #tpu.memory_space<vmem>>, vector<1x1x4x128xf32>
    %75 = vector.shape_cast %74 : vector<1x1x4x128xf32> to vector<4x128xf32>
    %76 = vector.broadcast %41 : vector<4x1xf32> to vector<4x128xf32>
    %77 = arith.mulf %75, %76 : vector<4x128xf32>
    %78 = vector.broadcast %44 : vector<4x1xf32> to vector<4x128xf32>
    %79 = arith.addf %77, %78 : vector<4x128xf32>
    %c0_45 = arith.constant 0 : index
    %80 = arith.index_cast %72 : i32 to index
    %c0_46 = arith.constant 0 : index
    %c0_47 = arith.constant 0 : index
    %81 = vector.load %arg5[%c0_45, %80, %c0_46, %c0_47] : memref<1x4x4x128xf32, #tpu.memory_space<vmem>>, vector<1x1x4x128xf32>
    %82 = vector.shape_cast %81 : vector<1x1x4x128xf32> to vector<4x128xf32>
    %83 = vector.shape_cast %79 : vector<4x128xf32> to vector<1x1x4x128xf32>
    tpu.vector_store %arg5[%c0_45, %80, %c0_46, %c0_47], %83 {strides = array<i32>} : memref<1x4x4x128xf32, #tpu.memory_space<vmem>>, vector<1x1x4x128xf32>,
    %c3_i32_48 = arith.constant 3 : i32
    %c1_i32_49 = arith.constant 1 : i32
    %84 = arith.muli %c3_i32_48, %c1_i32_49 : i32
    %c0_i32_50 = arith.constant 0 : i32
    %85 = arith.addi %c0_i32_50, %84 : i32
    %c0_51 = arith.constant 0 : index
    %86 = arith.index_cast %85 : i32 to index
    %c0_52 = arith.constant 0 : index
    %c0_53 = arith.constant 0 : index
    %87 = vector.load %arg2[%c0_51, %86, %c0_52, %c0_53] : memref<1x4x4x128xf32, #tpu.memory_space<vmem>>, vector<1x1x4x128xf32>
    %88 = vector.shape_cast %87 : vector<1x1x4x128xf32> to vector<4x128xf32>
    %89 = vector.broadcast %41 : vector<4x1xf32> to vector<4x128xf32>
    %90 = arith.mulf %88, %89 : vector<4x128xf32>
    %91 = vector.broadcast %44 : vector<4x1xf32> to vector<4x128xf32>
    %92 = arith.addf %90, %91 : vector<4x128xf32>
    %c0_54 = arith.constant 0 : index
    %93 = arith.index_cast %85 : i32 to index
    %c0_55 = arith.constant 0 : index
    %c0_56 = arith.constant 0 : index
    %94 = vector.load %arg5[%c0_54, %93, %c0_55, %c0_56] : memref<1x4x4x128xf32, #tpu.memory_space<vmem>>, vector<1x1x4x128xf32>
    %95 = vector.shape_cast %94 : vector<1x1x4x128xf32> to vector<4x128xf32>
    %96 = vector.shape_cast %92 : vector<4x128xf32> to vector<1x1x4x128xf32>
    tpu.vector_store %arg5[%c0_54, %93, %c0_55, %c0_56], %96 {strides = array<i32>} : memref<1x4x4x128xf32, #tpu.memory_space<vmem>>, vector<1x1x4x128xf32>,
    %c4_i32_57 = arith.constant 4 : i32
    return
  }
  func.func @transform_0(%arg0: i32, %arg1: i32) -> (i32, i32, i32, i32) {
    %c0_i32 = arith.constant 0 : i32
    %c0_i32_0 = arith.constant 0 : i32
    %c0_i32_1 = arith.constant 0 : i32
    return %arg0, %c0_i32, %arg1, %c0_i32_0 : i32, i32, i32, i32
  }
  func.func @transform_1(%arg0: i32, %arg1: i32) -> (i32, i32) {
    %c0_i32 = arith.constant 0 : i32
    %c0_i32_0 = arith.constant 0 : i32
    return %arg1, %c0_i32 : i32, i32
  }
  func.func @transform_2(%arg0: i32, %arg1: i32) -> (i32, i32) {
    %c0_i32 = arith.constant 0 : i32
    %c0_i32_0 = arith.constant 0 : i32
    return %arg1, %c0_i32 : i32, i32
  }
  func.func @transform_3(%arg0: i32, %arg1: i32) -> (i32, i32, i32, i32) {
    %c0_i32 = arith.constant 0 : i32
    %c0_i32_0 = arith.constant 0 : i32
    %c0_i32_1 = arith.constant 0 : i32
    return %arg0, %c0_i32, %arg1, %c0_i32_0 : i32, i32, i32, i32
  }
}

</mosaic_0001>

<llo_original>
// kernel: tpu_custom_call.1
$region0: #{tpu_custom_call.1}
  #allocation0 [shape = 'u32[]', space=smem, size = 0x4, offset = 0x4, fixed_abs, tag = 'smem constant byte address 0x4 - core index']
  #allocation1 [shape = 'u32[144,128]{1,0:T(1,128)}', space=vmem, size = 0x12000, scoped, tag = 'internal scratch']
  %s0 = inlined_call_operand.hbm [shape: f32[2,4,4,128], index: 0, kind: input, shape index: {}]
  %s1 = inlined_call_operand.vmem [shape: f32[4,1], index: 1, kind: input, shape index: {}]
  %s2 = inlined_call_operand.vmem [shape: f32[4,1], index: 2, kind: input, shape index: {}]
  %s3 = inlined_call_operand.hbm [shape: f32[2,4,4,128], index: 3, kind: output, shape index: {}]
  %s4 = sld [smem:[#allocation0]]
  $region49: #{tpu_custom_call.1} parent=0
    _
  %s6 = ssub.s32 1, %s4
  %s7 = scalar_select 0, %s6, %s4
  $region1: #{tpu_custom_call.1} parent=0
    #allocation2 [shape = 'u8[16384]{0}', space=vmem, size = 0x4000, scoped, tag = 'input window, operand 0']
    #allocation3 [shape = 's32[2]{0}', space=sflag, size = 0x8, scoped, tag = 'scoped memory for tpu_custom_call.1']
    #allocation4 [shape = 's32[2]{0}', space=sflag, size = 0x8, scoped, tag = 'scoped memory for tpu_custom_call.1']
    #allocation5 [shape = 'u8[16384]{0}', space=vmem, size = 0x4000, scoped, tag = 'output window, operand 0']
    %8 = vsyncpa [#allocation3], 0
    %s9 = scalar_lea.sflag [#allocation3], 1
    %10 = vsyncpa %s9, 0
    %11 = vsyncpa [#allocation4], 0
    %s12 = scalar_lea.sflag [#allocation4], 1
    %13 = vsyncpa %s12, 0
    loop: start=0, step=1, limit=4
    $region2: #{tpu_custom_call.1} parent=1 // loop_pre_header
      _
    $region3: #{tpu_custom_call.1} parent=1 // loop_header
      %s15 = sphi 0, %s19
      %p16 = scmp.ge.s32.totalorder %s15, 4
      %s22 = sphi 0, %s34
      %s23 = sphi 0, %s30
      %s24 = sphi 0, %s22
      %s25 = sphi 0, %s23
      %s26 = sphi 0, %s24
      %s27 = sphi 0, %s25
      %s39 = sphi 0, %s41
      %s42 = sphi 0, %s39
      %s43 = sphi 0, %s42
      %s59 = sphi 0, %s43
      %s65 = sphi 0, %s67
      %s68 = sphi 0, %s65
      %s69 = sphi 0, %s68
      %s85 = sphi 0, %s69
      %s91 = sphi 0, %s93
      %s94 = sphi 0, %s91
      %s95 = sphi 0, %s94
      %s111 = sphi 0, %s95
      %s119 = sphi 0, %s121
      %s122 = sphi 0, %s119
      %s123 = sphi 0, %s122
      %s139 = sphi 0, %s123
    $region4: #{tpu_custom_call.1} parent=1 // loop_header_branch
      %18 = sbr.rel (%p16) target = $region8
    $region5: #{tpu_custom_call.1} parent=1 // loop_body
      %s20 = ssub.s32 %s15, 1
      %s21 = ssub.s32 %s15, 2
      %s28 = sadd.s32 1, %s23
      %p29 = scmp.ge.s32.totalorder %s28, 1
      %s30 = scalar_select %p29, 0, %s28
      %s31 = sadd.s32 1, %s22
      %s32 = scalar_select %p29, %s31, %s22
      %p33 = scmp.ge.s32.totalorder %s32, 2
      %s34 = scalar_select %p33, 0, %s32
      %s35 = ssub.s32 %s22, %s34
      %s36 = ssub.s32 %s23, %s30
      %s37 = sor.u32 %s35, %s36
      %p38 = scmp.eq.s32.totalorder %s37, 0
      %s40 = sadd.s32 %s39, 1
      %s41 = scalar_select %p38, %s39, %s40
      %p44 = pneg %p38
      %p45 = scmp.eq.s32.totalorder %s15, 1
      %p46 = por %p44, %p45
      %p47 = scmp.ne.s32.totalorder %s39, %s42
      %p48 = scmp.eq.s32.totalorder %s15, 0
      %p49 = por %p47, %p48
      %p50 = scmp.ne.s32.totalorder %s39, %s42
      %p51 = scmp.eq.s32.totalorder %s20, 1
      %p52 = por %p50, %p51
      %p53 = scmp.ne.s32.totalorder %s42, %s43
      %p54 = scmp.eq.s32.totalorder %s20, 0
      %p55 = por %p53, %p54
      %p56 = scmp.ne.s32.totalorder %s42, %s43
      %p57 = scmp.eq.s32.totalorder %s21, 1
      %p58 = por %p56, %p57
      %p60 = scmp.ne.s32.totalorder %s43, %s59
      %p61 = scmp.eq.s32.totalorder %s21, 0
      %p62 = por %p60, %p61
      %s63 = ssub.s32 %s23, %s30
      %p64 = scmp.eq.s32.totalorder %s63, 0
      %s66 = sadd.s32 %s65, 1
      %s67 = scalar_select %p64, %s65, %s66
      %p70 = pneg %p64
      %p71 = scmp.eq.s32.totalorder %s15, 1
      %p72 = por %p70, %p71
      %p73 = scmp.ne.s32.totalorder %s65, %s68
      %p74 = scmp.eq.s32.totalorder %s15, 0
      %p75 = por %p73, %p74
      %p76 = scmp.ne.s32.totalorder %s65, %s68
      %p77 = scmp.eq.s32.totalorder %s20, 1
      %p78 = por %p76, %p77
      %p79 = scmp.ne.s32.totalorder %s68, %s69
      %p80 = scmp.eq.s32.totalorder %s20, 0
      %p81 = por %p79, %p80
      %p82 = scmp.ne.s32.totalorder %s68, %s69
      %p83 = scmp.eq.s32.totalorder %s21, 1
      %p84 = por %p82, %p83
      %p86 = scmp.ne.s32.totalorder %s69, %s85
      %p87 = scmp.eq.s32.totalorder %s21, 0
      %p88 = por %p86, %p87
      %s89 = ssub.s32 %s23, %s30
      %p90 = scmp.eq.s32.totalorder %s89, 0
      %s92 = sadd.s32 %s91, 1
      %s93 = scalar_select %p90, %s91, %s92
      %p96 = pneg %p90
      %p97 = scmp.eq.s32.totalorder %s15, 1
      %p98 = por %p96, %p97
      %p99 = scmp.ne.s32.totalorder %s91, %s94
      %p100 = scmp.eq.s32.totalorder %s15, 0
      %p101 = por %p99, %p100
      %p102 = scmp.ne.s32.totalorder %s91, %s94
      %p103 = scmp.eq.s32.totalorder %s20, 1
      %p104 = por %p102, %p103
      %p105 = scmp.ne.s32.totalorder %s94, %s95
      %p106 = scmp.eq.s32.totalorder %s20, 0
      %p107 = por %p105, %p106
      %p108 = scmp.ne.s32.totalorder %s94, %s95
      %p109 = scmp.eq.s32.totalorder %s21, 1
      %p110 = por %p108, %p109
      %p112 = scmp.ne.s32.totalorder %s95, %s111
      %p113 = scmp.eq.s32.totalorder %s21, 0
      %p114 = por %p112, %p113
      %s115 = ssub.s32 %s22, %s34
      %s116 = ssub.s32 %s23, %s30
      %s117 = sor.u32 %s115, %s116
      %p118 = scmp.eq.s32.totalorder %s117, 0
      %s120 = sadd.s32 %s119, 1
      %s121 = scalar_select %p118, %s119, %s120
      %p124 = pneg %p118
      %p125 = scmp.eq.s32.totalorder %s15, 1
      %p126 = por %p124, %p125
      %p127 = scmp.ne.s32.totalorder %s119, %s122
      %p128 = scmp.eq.s32.totalorder %s15, 0
      %p129 = por %p127, %p128
      %p130 = scmp.ne.s32.totalorder %s119, %s122
      %p131 = scmp.eq.s32.totalorder %s20, 1
      %p132 = por %p130, %p131
      %p133 = scmp.ne.s32.totalorder %s122, %s123
      %p134 = scmp.eq.s32.totalorder %s20, 0
      %p135 = por %p133, %p134
      %p136 = scmp.ne.s32.totalorder %s122, %s123
      %p137 = scmp.eq.s32.totalorder %s21, 1
      %p138 = por %p136, %p137
      %p140 = scmp.ne.s32.totalorder %s123, %s139
      %p141 = scmp.eq.s32.totalorder %s21, 0
      %p142 = por %p140, %p141
      %p143 = scmp.le.s32.totalorder 1, %s15
      %p144 = scmp.lt.s32.totalorder %s15, 3
      %p145 = pnand %p143, %p144
      %p146 = pneg %p145
      // Predicated region
      $region9: #{tpu_custom_call.1} parent=5 // pred_check
        _
      $region10: #{tpu_custom_call.1} parent=5 // pred_check_branch
        %148 = sbr.rel (%p145) target = $region12
      $region11: #{tpu_custom_call.1} parent=5 // pred_region
        %s149 = ssub.s32 %s15, 1
        // Predicated region
        $region13: #{tpu_custom_call.1} parent=11 // pred_check
          %p150 = pneg %p81
        $region14: #{tpu_custom_call.1} parent=11 // pred_check_branch
          %152 = sbr.rel (%p150) target = $region16
        $region15: #{tpu_custom_call.1} parent=11 // pred_region
          %p153 = scmp.lt.s32.totalorder %s25, 0
          %s154 = scalar_select %p153, %s25, 0
          %s155 = smul.addr %s154, 4
          %s156 = scalar_lea.vmem %s1, %s155
        $region16: #{tpu_custom_call.1} parent=11 // pred_fallthru
          _
        // Predicated region
        $region17: #{tpu_custom_call.1} parent=11 // pred_check
          %p157 = pneg %p107
        $region18: #{tpu_custom_call.1} parent=11 // pred_check_branch
          %159 = sbr.rel (%p157) target = $region20
        $region19: #{tpu_custom_call.1} parent=11 // pred_region
          %p160 = scmp.lt.s32.totalorder %s25, 0
          %s161 = scalar_select %p160, %s25, 0
          %s162 = smul.addr %s161, 4
          %s163 = scalar_lea.vmem %s2, %s162
        $region20: #{tpu_custom_call.1} parent=11 // pred_fallthru
          _
      $region12: #{tpu_custom_call.1} parent=5 // pred_fallthru
        _
      %p164 = scmp.lt.s32.totalorder %s15, 2
      // Predicated region
      $region21: #{tpu_custom_call.1} parent=5 // pred_check
        %p165 = pneg %p164
      $region22: #{tpu_custom_call.1} parent=5 // pred_check_branch
        %167 = sbr.rel (%p165) target = $region24
      $region23: #{tpu_custom_call.1} parent=5 // pred_region
        // Predicated region
        $region25: #{tpu_custom_call.1} parent=23 // pred_check
          %p168 = pneg %p49
        $region26: #{tpu_custom_call.1} parent=23 // pred_check_branch
          %170 = sbr.rel (%p168) target = $region28
        $region27: #{tpu_custom_call.1} parent=23 // pred_region
          %s171 = sand.u32 %s39, 1
          %s172 = scalar_lea.sflag [#allocation3], %s171
          %s173 = sand.u32 %s39, 1
          %s174 = smul.addr %s173, 16
          %s175 = scalar_lea.vmem [#allocation2], %s174
          %s177 = ssub.s32 256, 256
          %178 = vsyncadd %s172, %s177
          %s179 = smul.addr %s22, 4
          %s180 = sadd.s32 %s23, %s179
          %s181 = smul.addr %s180, 64
          %s182 = scalar_lea.hbm %s0, %s181
          %s183 = sshll.u32 %s175, 4
          %s184 = int_to_ptr.vmem [resolvable:$true] %s183
          %189 = dma.hbm_to_vmem [thread:$0]  %s182, 256, %s184, %s172, 64, 64, 4
        $region28: #{tpu_custom_call.1} parent=23 // pred_fallthru
          _
      $region24: #{tpu_custom_call.1} parent=5 // pred_fallthru
        _
      %p190 = scmp.le.s32.totalorder 1, %s15
      %p191 = scmp.lt.s32.totalorder %s15, 3
      %p192 = pnand %p190, %p191
      %p193 = pneg %p192
      // Predicated region
      $region29: #{tpu_custom_call.1} parent=5 // pred_check
        _
      $region30: #{tpu_custom_call.1} parent=5 // pred_check_branch
        %195 = sbr.rel (%p192) target = $region32
      $region31: #{tpu_custom_call.1} parent=5 // pred_region
        %s196 = ssub.s32 %s15, 1
        %s197 = sand.u32 %s42, 1
        %s198 = scalar_lea.sflag [#allocation3], %s197
        %s199 = sand.u32 %s42, 1
        %s200 = smul.addr %s199, 16
        %s201 = scalar_lea.vmem [#allocation2], %s200
        // Predicated region
        $region33: #{tpu_custom_call.1} parent=31 // pred_check
          %p202 = pneg %p55
        $region34: #{tpu_custom_call.1} parent=31 // pred_check_branch
          %204 = sbr.rel (%p202) target = $region36
        $region35: #{tpu_custom_call.1} parent=31 // pred_region
          %205 = dma.done %s198, 256
        $region36: #{tpu_custom_call.1} parent=31 // pred_fallthru
          _
        %s206 = sand.u32 %s42, 1
        %s207 = scalar_lea.sflag [#allocation3], %s206
        %s208 = sand.u32 %s42, 1
        %s209 = smul.addr %s208, 16
        %s210 = scalar_lea.vmem [#allocation2], %s209
        %p211 = pneg %p55
        %p212 = pneg %p52
        %p213 = scmp.lt.s32.totalorder %s25, 0
        %s214 = scalar_select %p213, %s25, 0
        %s215 = smul.addr %s214, 4
        %s216 = scalar_lea.vmem %s1, %s215
        %p217 = pneg %p81
        %p218 = pneg %p78
        %p219 = scmp.lt.s32.totalorder %s25, 0
        %s220 = scalar_select %p219, %s25, 0
        %s221 = smul.addr %s220, 4
        %s222 = scalar_lea.vmem %s2, %s221
        %p223 = pneg %p107
        %p224 = pneg %p104
        %p225 = pneg %p135
        %p226 = pneg %p132
        %s227 = sand.u32 %s122, 1
        %s228 = scalar_lea.sflag [#allocation4], %s227
        %s229 = sand.u32 %s122, 1
        %s230 = smul.addr %s229, 16
        %s231 = scalar_lea.vmem [#allocation5], %s230
        %p232 = scmp.lt.s32.totalorder %s25, 0
        %s233 = scalar_select %p232, %s25, 0
        %s234 = smul.addr %s233, 4
        %s235 = scalar_lea.vmem %s1, %s234
        %p236 = scmp.lt.s32.totalorder %s25, 0
        %s237 = scalar_select %p236, %s25, 0
        %s238 = smul.addr %s237, 4
        %s239 = scalar_lea.vmem %s2, %s238
        %v240 = vld [vmem:[%s201] sm:$0xf]
        %v241 = vadd.f32 %v240, 0.0
        %v242 = vmul.f32 %v240, %v240
        %v243 = vadd.f32 %v242, 0.0
        %s244 = scalar_lea.vmem %s201, 4 [#allocation2]
        %v245 = vld [vmem:[%s244] sm:$0xf]
        %v246 = vadd.f32 %v241, %v245
        %v247 = vmul.f32 %v245, %v245
        %v248 = vadd.f32 %v243, %v247
        %s249 = scalar_lea.vmem %s201, 8 [#allocation2]
        %v250 = vld [vmem:[%s249] sm:$0xf]
        %v251 = vadd.f32 %v246, %v250
        %v252 = vmul.f32 %v250, %v250
        %v253 = vadd.f32 %v248, %v252
        %s254 = scalar_lea.vmem %s201, 12 [#allocation2]
        %v255 = vld [vmem:[%s254] sm:$0xf]
        %v256 = vadd.f32 %v251, %v255
        %v257 = vmul.f32 %v255, %v255
        %v258 = vadd.f32 %v253, %v257
        %vm259 = vcmask 1043456
        %v260 = vsel %vm259, %v256, 0.0
        %261 = vadd.xlane.f32.xlu0 %v260
        %v262 = vpop.xlane.xlu0 %261
        %v263 = vsel %vm259, %v258, 0.0
        %264 = vadd.xlane.f32.xlu0 %v263
        %v265 = vpop.xlane.xlu0 %264
        %v266 = vmul.f32 %v262, 0.001953125
        %v267 = vmul.f32 %v266, %v262
        %v268 = vsub.f32 %v265, %v267
        %v269 = vmul.f32 %v268, 0.0019569471
        %v270 = vmax.f32 %v269, 0.0
        %v271 = vadd.f32 %v270, 1e-08
        %v272 = vrsqrt.pop %v271
        %v273 = vld [vmem:[%s235] sm:$0xf]
        %v274 = vmul.f32 %v273, %v272
        %v275 = vld [vmem:[%s239] sm:$0xf]
        %v276 = vmul.f32 %v266, %v274
        %v277 = vsub.f32 %v275, %v276
        %279 = vset.pattern.permute.xlu0 0
        %280 = vperm.xlu0 %279, %v274
        %v281 = vpop.permute.xlu0 %280
        %v283 = vmul.f32 %v240, %v281
        %285 = vset.pattern.permute.xlu0 0
        %286 = vperm.xlu0 %285, %v277
        %v287 = vpop.permute.xlu0 %286
        %v289 = vadd.f32 %v283, %v287
        %290 = vst [vmem:[%s231] sm:$0xf] %v289
        %v291 = vld [vmem:[%s244] sm:$0xf]
        %v292 = vmul.f32 %v291, %v281
        %v293 = vadd.f32 %v292, %v287
        %s294 = scalar_lea.vmem %s231, 4 [#allocation5]
        %295 = vst [vmem:[%s294] sm:$0xf] %v293
        %v296 = vld [vmem:[%s249] sm:$0xf]
        %v297 = vmul.f32 %v296, %v281
        %v298 = vadd.f32 %v297, %v287
        %s299 = scalar_lea.vmem %s231, 8 [#allocation5]
        %300 = vst [vmem:[%s299] sm:$0xf] %v298
        %v301 = vld [vmem:[%s254] sm:$0xf]
        %v302 = vmul.f32 %v301, %v281
        %v303 = vadd.f32 %v302, %v287
        %s304 = scalar_lea.vmem %s231, 12 [#allocation5]
        %305 = vst [vmem:[%s304] sm:$0xf] %v303
        %s306 = sand.u32 %s122, 1
        %s307 = scalar_lea.sflag [#allocation4], %s306
        %s308 = sand.u32 %s122, 1
        %s309 = smul.addr %s308, 16
        %s310 = scalar_lea.vmem [#allocation5], %s309
        // Predicated region
        $region37: #{tpu_custom_call.1} parent=31 // pred_check
          %p311 = pneg %p132
        $region38: #{tpu_custom_call.1} parent=31 // pred_check_branch
          %313 = sbr.rel (%p311) target = $region40
        $region39: #{tpu_custom_call.1} parent=31 // pred_region
          %s315 = ssub.s32 256, 256
          %316 = vsyncadd %s307, %s315
          %s317 = smul.addr %s24, 4
          %s318 = sadd.s32 %s25, %s317
          %s319 = smul.addr %s318, 64
          %s320 = scalar_lea.hbm %s3, %s319
          %s321 = sshll.u32 %s310, 4
          %s322 = int_to_ptr.vmem [resolvable:$true] %s321
          %327 = dma.vmem_to_hbm [thread:$0]  %s322, 256, %s320, %s307, 64, 64, 4
        $region40: #{tpu_custom_call.1} parent=31 // pred_fallthru
          _
      $region32: #{tpu_custom_call.1} parent=5 // pred_fallthru
        _
      %p328 = scmp.le.s32.totalorder 2, %s15
      // Predicated region
      $region41: #{tpu_custom_call.1} parent=5 // pred_check
        %p329 = pneg %p328
      $region42: #{tpu_custom_call.1} parent=5 // pred_check_branch
        %331 = sbr.rel (%p329) target = $region44
      $region43: #{tpu_custom_call.1} parent=5 // pred_region
        %s332 = ssub.s32 %s15, 2
        // Predicated region
        $region45: #{tpu_custom_call.1} parent=43 // pred_check
          %p333 = pneg %p138
        $region46: #{tpu_custom_call.1} parent=43 // pred_check_branch
          %335 = sbr.rel (%p333) target = $region48
        $region47: #{tpu_custom_call.1} parent=43 // pred_region
          %s336 = sand.u32 %s123, 1
          %s337 = scalar_lea.sflag [#allocation4], %s336
          %s338 = sand.u32 %s123, 1
          %s339 = smul.addr %s338, 16
          %s340 = scalar_lea.vmem [#allocation5], %s339
          %341 = dma.done %s337, 256
        $region48: #{tpu_custom_call.1} parent=43 // pred_fallthru
          _
      $region44: #{tpu_custom_call.1} parent=5 // pred_fallthru
        _
    $region6: #{tpu_custom_call.1} parent=1 // loop_footer
      %s19 = sadd.s32 1, %s15
    $region7: #{tpu_custom_call.1} parent=1 // loop_footer_branch
      %14 = sbr.rel target = $region3
    $region8: #{tpu_custom_call.1} parent=1 // loop_exit
      _
    %342 = vsyncpa [#allocation3], 1
    %s343 = scalar_lea.sflag [#allocation3], 1
    %344 = vsyncpa %s343, 1
    %345 = vsyncpa [#allocation4], 1
    %s346 = scalar_lea.sflag [#allocation4], 1
    %347 = vsyncpa %s346, 1

</llo_original>
